<compile_context>
chip_gen: v7x
topology: tpu7x:2x2x1
jax: 0.10.0
libtpu: 0.0.40
codegen_flags: <defaults>
</compile_context>

<pallas_src>
import functools
import math

import jax
import jax.numpy as jnp
from jax import lax
from jax.experimental import pallas as pl
from jax.experimental.pallas import tpu as pltpu


def _round_up(x: int, m: int) -> int:
    return (x + m - 1) // m * m


def _fused_emb_linear_gelu_kernel(idx_ref,    # (n_pad,) int32, SMEM (scalar prefetch)
                                  emb_hbm,    # (concept_num, in_pad) f32, HBM (pl.ANY)
                                  w_ref,      # (in_pad, out_pad) bf16, VMEM-resident
                                  b_ref,      # (1, out_pad) f32, VMEM-resident
                                  o_ref,      # (tile_m, out_pad) f32 output tile
                                  x_buf,      # VMEM scratch (tile_m, in_pad) f32
                                  sems,       # DMA semaphores (tile_m,)
                                  *, tile_m: int, scale: float):
    m = pl.program_id(0)
    base = m * tile_m

    # Gather tile_m embedding rows from HBM into VMEM (one DMA per row).
    copies = []
    for r in range(tile_m):            # static unrolled loop (tile_m is compile-time)
        row = idx_ref[base + r]
        cp = pltpu.make_async_copy(
            emb_hbm.at[pl.ds(row, 1), :],
            x_buf.at[pl.ds(r, 1), :],
            sems.at[r])
        cp.start()
        copies.append(cp)
    for cp in copies:
        cp.wait()

    # scale in f32, matmul in bf16 on the MXU with f32 accumulation.
    x = x_buf[...] * jnp.float32(scale)
    y = jnp.dot(x.astype(jnp.bfloat16), w_ref[...],
                preferred_element_type=jnp.float32)
    y = y + b_ref[...]

    # exact GELU: 0.5 * y * (1 + erf(y / sqrt(2)))  (torch.nn.GELU default)
    inv_sqrt2 = jnp.float32(0.7071067811865476)
    y = 0.5 * y * (1.0 + lax.erf(y * inv_sqrt2))
    o_ref[...] = y.astype(o_ref.dtype)


def customized_embedding_forward(index, emb_table, w_t, b, *, scale=1.0, tile_m=8):
    """Fused forward of CustomizedEmbedding (non-contextualized, with cpt_transform).

    index:     (bz, a) int32
    emb_table: (concept_num, concept_in_dim) f32  (frozen nn.Embedding weight)
    w_t:       (concept_in_dim, concept_out_dim) f32  (transpose of nn.Linear.weight)
    b:         (concept_out_dim,) f32
    returns:   (bz, a, concept_out_dim) f32
    """
    # TODO(synk): contextualized_emb branch (gather along dim 1 of a provided tensor)
    #             and the concept_in_dim == concept_out_dim branch (no cpt_transform,
    #             pure gather*scale) are not exercised by this fused kernel.
    bz, a = index.shape
    concept_num, in_dim = emb_table.shape
    out_dim = w_t.shape[1]

    # Lane-dense padding of feature dims (multiples of 128); sliced off at the end.
    in_pad = max(128, _round_up(in_dim, 128))
    out_pad = max(128, _round_up(out_dim, 128))

    emb_p = jnp.pad(emb_table, ((0, 0), (0, in_pad - in_dim)))
    w_p = jnp.pad(w_t, ((0, in_pad - in_dim), (0, out_pad - out_dim))).astype(jnp.bfloat16)
    b_p = jnp.pad(b.reshape(1, -1), ((0, 0), (0, out_pad - out_dim)))

    n_tok = bz * a
    n_pad = _round_up(n_tok, tile_m)
    idx_flat = jnp.pad(index.reshape(-1).astype(jnp.int32), (0, n_pad - n_tok))

    kernel = functools.partial(_fused_emb_linear_gelu_kernel,
                               tile_m=tile_m, scale=float(scale))

    out = pl.pallas_call(
        kernel,
        out_shape=jax.ShapeDtypeStruct((n_pad, out_pad), jnp.float32),
        grid_spec=pltpu.PrefetchScalarGridSpec(
            num_scalar_prefetch=1,
            grid=(n_pad // tile_m,),
            in_specs=[
                pl.BlockSpec(memory_space=pl.ANY),                        # emb table (HBM)
                pl.BlockSpec((in_pad, out_pad), lambda m, idx: (0, 0)),   # W, VMEM-resident
                pl.BlockSpec((1, out_pad), lambda m, idx: (0, 0)),        # b, VMEM-resident
            ],
            out_specs=pl.BlockSpec((tile_m, out_pad), lambda m, idx: (m, 0)),
            scratch_shapes=[
                pltpu.VMEM((tile_m, in_pad), jnp.float32),   # gathered rows
                pltpu.SemaphoreType.DMA((tile_m,)),          # per-row DMA sems
            ]),
        compiler_params=pltpu.CompilerParams(
            dimension_semantics=("parallel",),               # shard token tiles on v7x's 2 TCs
            vmem_limit_bytes=32 * 1024 * 1024),              # safe vs v7x 64 MiB physical VMEM
    )(idx_flat, emb_p, w_p, b_p)

    return out[:n_tok, :out_dim].reshape(bz, a, out_dim)


if __name__ == "__main__":
    # Small shapes consistent with the module's forward: index (bz, a).
    concept_num = 32
    concept_in_dim = 32
    concept_out_dim = 16      # != concept_in_dim -> cpt_transform + GELU path
    bz, a = 2, 8
    scale = 2.0
    init_range = 0.02

    key = jax.random.PRNGKey(0)
    k_emb, k_w, k_b, k_idx = jax.random.split(key, 4)

    # nn.Embedding weight ~ N(0, init_range); frozen.
    emb_table = init_range * jax.random.normal(
        k_emb, (concept_num, concept_in_dim), jnp.float32)
    # nn.Linear init: uniform(+-1/sqrt(fan_in)); stored transposed as (in, out).
    bound = 1.0 / math.sqrt(concept_in_dim)
    w_t = jax.random.uniform(k_w, (concept_in_dim, concept_out_dim),
                             jnp.float32, -bound, bound)
    b = jax.random.uniform(k_b, (concept_out_dim,), jnp.float32, -bound, bound)

    index = jax.random.randint(k_idx, (bz, a), 0, concept_num, dtype=jnp.int32)

    out = customized_embedding_forward(index, emb_table, w_t, b, scale=scale)
    out = jax.block_until_ready(out)

    # Pure-JAX f32 reference of the same forward.
    gathered = emb_table[index.reshape(-1)]
    h = gathered * scale
    h = h @ w_t + b
    ref = 0.5 * h * (1.0 + lax.erf(h * (1.0 / math.sqrt(2.0))))
    ref = ref.reshape(bz, a, concept_out_dim)

    assert out.shape == (bz, a, concept_out_dim)
    # bf16 MXU inputs with f32 accumulation -> slightly looser tolerance than pure f32.
    assert jnp.allclose(out, ref, atol=5e-3, rtol=5e-3), float(jnp.max(jnp.abs(out - ref)))

    print("KERNEL_OK")
</pallas_src>

<mosaic_0001>
module attributes {stable_mosaic.version = 11 : i64} {
  func.func @_fused_emb_linear_gelu_kernel(%arg0: i32, %arg1: memref<16xi32, #tpu.memory_space<smem>>, %arg2: memref<32x128xf32, #tpu.memory_space<any>>, %arg3: memref<128x128xbf16, #tpu.memory_space<vmem>>, %arg4: memref<1x128xf32, #tpu.memory_space<vmem>>, %arg5: memref<8x128xf32, #tpu.memory_space<vmem>>, %arg6: memref<8x128xf32, #tpu.memory_space<vmem>>, %arg7: memref<8x!tpu.dma_semaphore, #tpu.memory_space<semaphore_mem>>) attributes {dimension_semantics = [#tpu.dimension_semantics<parallel>], iteration_bounds = array<i64: 2>, scalar_prefetch = 1 : i64, scratch_operands = 2 : i64, tpu.core_type = #tpu.core_type<tc>, window_params = [{}, {pipeline_mode = #tpu.pipeline_mode<synchronous>, transform_indices = @transform_1, window_bounds = array<i64: 128, 128>}, {pipeline_mode = #tpu.pipeline_mode<synchronous>, transform_indices = @transform_2, window_bounds = array<i64: 1, 128>}, {transform_indices = @transform_3, window_bounds = array<i64: 8, 128>}]} {
    %c8_i32 = arith.constant 8 : i32
    %0 = arith.muli %arg0, %c8_i32 : i32
    %c0_i32 = arith.constant 0 : i32
    %1 = arith.addi %0, %c0_i32 : i32
    %2 = arith.index_cast %1 : i32 to index
    %3 = memref.load %arg1[%2] : memref<16xi32, #tpu.memory_space<smem>>
    %c0_i32_0 = arith.constant 0 : i32
    %c0_i32_1 = arith.constant 0 : i32
    %4 = tpu.memref_slice %arg2[%3, %c0_i32_1] : memref<32x128xf32, #tpu.memory_space<any>> -> memref<1x128xf32, #tpu.memory_space<any>>
    %c0_i32_2 = arith.constant 0 : i32
    %c0_i32_3 = arith.constant 0 : i32
    %5 = tpu.memref_slice %arg6[%c0_i32_2, %c0_i32_3] : memref<8x128xf32, #tpu.memory_space<vmem>> -> memref<1x128xf32, #tpu.memory_space<vmem>>
    %6 = tpu.memref_slice %arg7[%c0_i32_0] : memref<8x!tpu.dma_semaphore, #tpu.memory_space<semaphore_mem>> -> memref<1x!tpu.dma_semaphore, #tpu.memory_space<semaphore_mem>>
    %7 = tpu.memref_squeeze %6 : memref<1x!tpu.dma_semaphore, #tpu.memory_space<semaphore_mem>> -> memref<!tpu.dma_semaphore, #tpu.memory_space<semaphore_mem>>
    tpu.enqueue_dma source(%4 : memref<1x128xf32, #tpu.memory_space<any>>) target(%5 : memref<1x128xf32, #tpu.memory_space<vmem>>) target_semaphore(%7 : memref<!tpu.dma_semaphore, #tpu.memory_space<semaphore_mem>>)
    %c1_i32 = arith.constant 1 : i32
    %8 = arith.addi %0, %c1_i32 : i32
    %9 = arith.index_cast %8 : i32 to index
    %10 = memref.load %arg1[%9] : memref<16xi32, #tpu.memory_space<smem>>
    %c1_i32_4 = arith.constant 1 : i32
    %c0_i32_5 = arith.constant 0 : i32
    %11 = tpu.memref_slice %arg2[%10, %c0_i32_5] : memref<32x128xf32, #tpu.memory_space<any>> -> memref<1x128xf32, #tpu.memory_space<any>>
    %c1_i32_6 = arith.constant 1 : i32
    %c0_i32_7 = arith.constant 0 : i32
    %12 = tpu.memref_slice %arg6[%c1_i32_6, %c0_i32_7] : memref<8x128xf32, #tpu.memory_space<vmem>> -> memref<1x128xf32, #tpu.memory_space<vmem>>
    %13 = tpu.memref_slice %arg7[%c1_i32_4] : memref<8x!tpu.dma_semaphore, #tpu.memory_space<semaphore_mem>> -> memref<1x!tpu.dma_semaphore, #tpu.memory_space<semaphore_mem>>
    %14 = tpu.memref_squeeze %13 : memref<1x!tpu.dma_semaphore, #tpu.memory_space<semaphore_mem>> -> memref<!tpu.dma_semaphore, #tpu.memory_space<semaphore_mem>>
    tpu.enqueue_dma source(%11 : memref<1x128xf32, #tpu.memory_space<any>>) target(%12 : memref<1x128xf32, #tpu.memory_space<vmem>>) target_semaphore(%14 : memref<!tpu.dma_semaphore, #tpu.memory_space<semaphore_mem>>)
    %c2_i32 = arith.constant 2 : i32
    %15 = arith.addi %0, %c2_i32 : i32
    %16 = arith.index_cast %15 : i32 to index
    %17 = memref.load %arg1[%16] : memref<16xi32, #tpu.memory_space<smem>>
    %c2_i32_8 = arith.constant 2 : i32
    %c0_i32_9 = arith.constant 0 : i32
    %18 = tpu.memref_slice %arg2[%17, %c0_i32_9] : memref<32x128xf32, #tpu.memory_space<any>> -> memref<1x128xf32, #tpu.memory_space<any>>
    %c2_i32_10 = arith.constant 2 : i32
    %c0_i32_11 = arith.constant 0 : i32
    %19 = tpu.memref_slice %arg6[%c2_i32_10, %c0_i32_11] : memref<8x128xf32, #tpu.memory_space<vmem>> -> memref<1x128xf32, #tpu.memory_space<vmem>>
    %20 = tpu.memref_slice %arg7[%c2_i32_8] : memref<8x!tpu.dma_semaphore, #tpu.memory_space<semaphore_mem>> -> memref<1x!tpu.dma_semaphore, #tpu.memory_space<semaphore_mem>>
    %21 = tpu.memref_squeeze %20 : memref<1x!tpu.dma_semaphore, #tpu.memory_space<semaphore_mem>> -> memref<!tpu.dma_semaphore, #tpu.memory_space<semaphore_mem>>
    tpu.enqueue_dma source(%18 : memref<1x128xf32, #tpu.memory_space<any>>) target(%19 : memref<1x128xf32, #tpu.memory_space<vmem>>) target_semaphore(%21 : memref<!tpu.dma_semaphore, #tpu.memory_space<semaphore_mem>>)
    %c3_i32 = arith.constant 3 : i32
    %22 = arith.addi %0, %c3_i32 : i32
    %23 = arith.index_cast %22 : i32 to index
    %24 = memref.load %arg1[%23] : memref<16xi32, #tpu.memory_space<smem>>
    %c3_i32_12 = arith.constant 3 : i32
    %c0_i32_13 = arith.constant 0 : i32
    %25 = tpu.memref_slice %arg2[%24, %c0_i32_13] : memref<32x128xf32, #tpu.memory_space<any>> -> memref<1x128xf32, #tpu.memory_space<any>>
    %c3_i32_14 = arith.constant 3 : i32
    %c0_i32_15 = arith.constant 0 : i32
    %26 = tpu.memref_slice %arg6[%c3_i32_14, %c0_i32_15] : memref<8x128xf32, #tpu.memory_space<vmem>> -> memref<1x128xf32, #tpu.memory_space<vmem>>
    %27 = tpu.memref_slice %arg7[%c3_i32_12] : memref<8x!tpu.dma_semaphore, #tpu.memory_space<semaphore_mem>> -> memref<1x!tpu.dma_semaphore, #tpu.memory_space<semaphore_mem>>
    %28 = tpu.memref_squeeze %27 : memref<1x!tpu.dma_semaphore, #tpu.memory_space<semaphore_mem>> -> memref<!tpu.dma_semaphore, #tpu.memory_space<semaphore_mem>>
    tpu.enqueue_dma source(%25 : memref<1x128xf32, #tpu.memory_space<any>>) target(%26 : memref<1x128xf32, #tpu.memory_space<vmem>>) target_semaphore(%28 : memref<!tpu.dma_semaphore, #tpu.memory_space<semaphore_mem>>)
    %c4_i32 = arith.constant 4 : i32
    %29 = arith.addi %0, %c4_i32 : i32
    %30 = arith.index_cast %29 : i32 to index
    %31 = memref.load %arg1[%30] : memref<16xi32, #tpu.memory_space<smem>>
    %c4_i32_16 = arith.constant 4 : i32
    %c0_i32_17 = arith.constant 0 : i32
    %32 = tpu.memref_slice %arg2[%31, %c0_i32_17] : memref<32x128xf32, #tpu.memory_space<any>> -> memref<1x128xf32, #tpu.memory_space<any>>
    %c4_i32_18 = arith.constant 4 : i32
    %c0_i32_19 = arith.constant 0 : i32
    %33 = tpu.memref_slice %arg6[%c4_i32_18, %c0_i32_19] : memref<8x128xf32, #tpu.memory_space<vmem>> -> memref<1x128xf32, #tpu.memory_space<vmem>>
    %34 = tpu.memref_slice %arg7[%c4_i32_16] : memref<8x!tpu.dma_semaphore, #tpu.memory_space<semaphore_mem>> -> memref<1x!tpu.dma_semaphore, #tpu.memory_space<semaphore_mem>>
    %35 = tpu.memref_squeeze %34 : memref<1x!tpu.dma_semaphore, #tpu.memory_space<semaphore_mem>> -> memref<!tpu.dma_semaphore, #tpu.memory_space<semaphore_mem>>
    tpu.enqueue_dma source(%32 : memref<1x128xf32, #tpu.memory_space<any>>) target(%33 : memref<1x128xf32, #tpu.memory_space<vmem>>) target_semaphore(%35 : memref<!tpu.dma_semaphore, #tpu.memory_space<semaphore_mem>>)
    %c5_i32 = arith.constant 5 : i32
    %36 = arith.addi %0, %c5_i32 : i32
    %37 = arith.index_cast %36 : i32 to index
    %38 = memref.load %arg1[%37] : memref<16xi32, #tpu.memory_space<smem>>
    %c5_i32_20 = arith.constant 5 : i32
    %c0_i32_21 = arith.constant 0 : i32
    %39 = tpu.memref_slice %arg2[%38, %c0_i32_21] : memref<32x128xf32, #tpu.memory_space<any>> -> memref<1x128xf32, #tpu.memory_space<any>>
    %c5_i32_22 = arith.constant 5 : i32
    %c0_i32_23 = arith.constant 0 : i32
    %40 = tpu.memref_slice %arg6[%c5_i32_22, %c0_i32_23] : memref<8x128xf32, #tpu.memory_space<vmem>> -> memref<1x128xf32, #tpu.memory_space<vmem>>
    %41 = tpu.memref_slice %arg7[%c5_i32_20] : memref<8x!tpu.dma_semaphore, #tpu.memory_space<semaphore_mem>> -> memref<1x!tpu.dma_semaphore, #tpu.memory_space<semaphore_mem>>
    %42 = tpu.memref_squeeze %41 : memref<1x!tpu.dma_semaphore, #tpu.memory_space<semaphore_mem>> -> memref<!tpu.dma_semaphore, #tpu.memory_space<semaphore_mem>>
    tpu.enqueue_dma source(%39 : memref<1x128xf32, #tpu.memory_space<any>>) target(%40 : memref<1x128xf32, #tpu.memory_space<vmem>>) target_semaphore(%42 : memref<!tpu.dma_semaphore, #tpu.memory_space<semaphore_mem>>)
    %c6_i32 = arith.constant 6 : i32
    %43 = arith.addi %0, %c6_i32 : i32
    %44 = arith.index_cast %43 : i32 to index
    %45 = memref.load %arg1[%44] : memref<16xi32, #tpu.memory_space<smem>>
    %c6_i32_24 = arith.constant 6 : i32
    %c0_i32_25 = arith.constant 0 : i32
    %46 = tpu.memref_slice %arg2[%45, %c0_i32_25] : memref<32x128xf32, #tpu.memory_space<any>> -> memref<1x128xf32, #tpu.memory_space<any>>
    %c6_i32_26 = arith.constant 6 : i32
    %c0_i32_27 = arith.constant 0 : i32
    %47 = tpu.memref_slice %arg6[%c6_i32_26, %c0_i32_27] : memref<8x128xf32, #tpu.memory_space<vmem>> -> memref<1x128xf32, #tpu.memory_space<vmem>>
    %48 = tpu.memref_slice %arg7[%c6_i32_24] : memref<8x!tpu.dma_semaphore, #tpu.memory_space<semaphore_mem>> -> memref<1x!tpu.dma_semaphore, #tpu.memory_space<semaphore_mem>>
    %49 = tpu.memref_squeeze %48 : memref<1x!tpu.dma_semaphore, #tpu.memory_space<semaphore_mem>> -> memref<!tpu.dma_semaphore, #tpu.memory_space<semaphore_mem>>
    tpu.enqueue_dma source(%46 : memref<1x128xf32, #tpu.memory_space<any>>) target(%47 : memref<1x128xf32, #tpu.memory_space<vmem>>) target_semaphore(%49 : memref<!tpu.dma_semaphore, #tpu.memory_space<semaphore_mem>>)
    %c7_i32 = arith.constant 7 : i32
    %50 = arith.addi %0, %c7_i32 : i32
    %51 = arith.index_cast %50 : i32 to index
    %52 = memref.load %arg1[%51] : memref<16xi32, #tpu.memory_space<smem>>
    %c7_i32_28 = arith.constant 7 : i32
    %c0_i32_29 = arith.constant 0 : i32
    %53 = tpu.memref_slice %arg2[%52, %c0_i32_29] : memref<32x128xf32, #tpu.memory_space<any>> -> memref<1x128xf32, #tpu.memory_space<any>>
    %c7_i32_30 = arith.constant 7 : i32
    %c0_i32_31 = arith.constant 0 : i32
    %54 = tpu.memref_slice %arg6[%c7_i32_30, %c0_i32_31] : memref<8x128xf32, #tpu.memory_space<vmem>> -> memref<1x128xf32, #tpu.memory_space<vmem>>
    %55 = tpu.memref_slice %arg7[%c7_i32_28] : memref<8x!tpu.dma_semaphore, #tpu.memory_space<semaphore_mem>> -> memref<1x!tpu.dma_semaphore, #tpu.memory_space<semaphore_mem>>
    %56 = tpu.memref_squeeze %55 : memref<1x!tpu.dma_semaphore, #tpu.memory_space<semaphore_mem>> -> memref<!tpu.dma_semaphore, #tpu.memory_space<semaphore_mem>>
    tpu.enqueue_dma source(%53 : memref<1x128xf32, #tpu.memory_space<any>>) target(%54 : memref<1x128xf32, #tpu.memory_space<vmem>>) target_semaphore(%56 : memref<!tpu.dma_semaphore, #tpu.memory_space<semaphore_mem>>)
    %c0_i32_32 = arith.constant 0 : i32
    %c0_i32_33 = arith.constant 0 : i32
    %57 = tpu.memref_slice %arg2[%3, %c0_i32_33] : memref<32x128xf32, #tpu.memory_space<any>> -> memref<1x128xf32, #tpu.memory_space<any>>
    %c0_i32_34 = arith.constant 0 : i32
    %c0_i32_35 = arith.constant 0 : i32
    %58 = tpu.memref_slice %arg6[%c0_i32_34, %c0_i32_35] : memref<8x128xf32, #tpu.memory_space<vmem>> -> memref<1x128xf32, #tpu.memory_space<vmem>>
    %59 = tpu.memref_slice %arg7[%c0_i32_32] : memref<8x!tpu.dma_semaphore, #tpu.memory_space<semaphore_mem>> -> memref<1x!tpu.dma_semaphore, #tpu.memory_space<semaphore_mem>>
    %60 = tpu.memref_squeeze %59 : memref<1x!tpu.dma_semaphore, #tpu.memory_space<semaphore_mem>> -> memref<!tpu.dma_semaphore, #tpu.memory_space<semaphore_mem>>
    tpu.wait_dma2 semaphore(%60 : memref<!tpu.dma_semaphore, #tpu.memory_space<semaphore_mem>>) src(%57 : memref<1x128xf32, #tpu.memory_space<any>>) dst(%58 : memref<1x128xf32, #tpu.memory_space<vmem>>)
    %c1_i32_36 = arith.constant 1 : i32
    %c0_i32_37 = arith.constant 0 : i32
    %61 = tpu.memref_slice %arg2[%10, %c0_i32_37] : memref<32x128xf32, #tpu.memory_space<any>> -> memref<1x128xf32, #tpu.memory_space<any>>
    %c1_i32_38 = arith.constant 1 : i32
    %c0_i32_39 = arith.constant 0 : i32
    %62 = tpu.memref_slice %arg6[%c1_i32_38, %c0_i32_39] : memref<8x128xf32, #tpu.memory_space<vmem>> -> memref<1x128xf32, #tpu.memory_space<vmem>>
    %63 = tpu.memref_slice %arg7[%c1_i32_36] : memref<8x!tpu.dma_semaphore, #tpu.memory_space<semaphore_mem>> -> memref<1x!tpu.dma_semaphore, #tpu.memory_space<semaphore_mem>>
    %64 = tpu.memref_squeeze %63 : memref<1x!tpu.dma_semaphore, #tpu.memory_space<semaphore_mem>> -> memref<!tpu.dma_semaphore, #tpu.memory_space<semaphore_mem>>
    tpu.wait_dma2 semaphore(%64 : memref<!tpu.dma_semaphore, #tpu.memory_space<semaphore_mem>>) src(%61 : memref<1x128xf32, #tpu.memory_space<any>>) dst(%62 : memref<1x128xf32, #tpu.memory_space<vmem>>)
    %c2_i32_40 = arith.constant 2 : i32
    %c0_i32_41 = arith.constant 0 : i32
    %65 = tpu.memref_slice %arg2[%17, %c0_i32_41] : memref<32x128xf32, #tpu.memory_space<any>> -> memref<1x128xf32, #tpu.memory_space<any>>
    %c2_i32_42 = arith.constant 2 : i32
    %c0_i32_43 = arith.constant 0 : i32
    %66 = tpu.memref_slice %arg6[%c2_i32_42, %c0_i32_43] : memref<8x128xf32, #tpu.memory_space<vmem>> -> memref<1x128xf32, #tpu.memory_space<vmem>>
    %67 = tpu.memref_slice %arg7[%c2_i32_40] : memref<8x!tpu.dma_semaphore, #tpu.memory_space<semaphore_mem>> -> memref<1x!tpu.dma_semaphore, #tpu.memory_space<semaphore_mem>>
    %68 = tpu.memref_squeeze %67 : memref<1x!tpu.dma_semaphore, #tpu.memory_space<semaphore_mem>> -> memref<!tpu.dma_semaphore, #tpu.memory_space<semaphore_mem>>
    tpu.wait_dma2 semaphore(%68 : memref<!tpu.dma_semaphore, #tpu.memory_space<semaphore_mem>>) src(%65 : memref<1x128xf32, #tpu.memory_space<any>>) dst(%66 : memref<1x128xf32, #tpu.memory_space<vmem>>)
    %c3_i32_44 = arith.constant 3 : i32
    %c0_i32_45 = arith.constant 0 : i32
    %69 = tpu.memref_slice %arg2[%24, %c0_i32_45] : memref<32x128xf32, #tpu.memory_space<any>> -> memref<1x128xf32, #tpu.memory_space<any>>
    %c3_i32_46 = arith.constant 3 : i32
    %c0_i32_47 = arith.constant 0 : i32
    %70 = tpu.memref_slice %arg6[%c3_i32_46, %c0_i32_47] : memref<8x128xf32, #tpu.memory_space<vmem>> -> memref<1x128xf32, #tpu.memory_space<vmem>>
    %71 = tpu.memref_slice %arg7[%c3_i32_44] : memref<8x!tpu.dma_semaphore, #tpu.memory_space<semaphore_mem>> -> memref<1x!tpu.dma_semaphore, #tpu.memory_space<semaphore_mem>>
    %72 = tpu.memref_squeeze %71 : memref<1x!tpu.dma_semaphore, #tpu.memory_space<semaphore_mem>> -> memref<!tpu.dma_semaphore, #tpu.memory_space<semaphore_mem>>
    tpu.wait_dma2 semaphore(%72 : memref<!tpu.dma_semaphore, #tpu.memory_space<semaphore_mem>>) src(%69 : memref<1x128xf32, #tpu.memory_space<any>>) dst(%70 : memref<1x128xf32, #tpu.memory_space<vmem>>)
    %c4_i32_48 = arith.constant 4 : i32
    %c0_i32_49 = arith.constant 0 : i32
    %73 = tpu.memref_slice %arg2[%31, %c0_i32_49] : memref<32x128xf32, #tpu.memory_space<any>> -> memref<1x128xf32, #tpu.memory_space<any>>
    %c4_i32_50 = arith.constant 4 : i32
    %c0_i32_51 = arith.constant 0 : i32
    %74 = tpu.memref_slice %arg6[%c4_i32_50, %c0_i32_51] : memref<8x128xf32, #tpu.memory_space<vmem>> -> memref<1x128xf32, #tpu.memory_space<vmem>>
    %75 = tpu.memref_slice %arg7[%c4_i32_48] : memref<8x!tpu.dma_semaphore, #tpu.memory_space<semaphore_mem>> -> memref<1x!tpu.dma_semaphore, #tpu.memory_space<semaphore_mem>>
    %76 = tpu.memref_squeeze %75 : memref<1x!tpu.dma_semaphore, #tpu.memory_space<semaphore_mem>> -> memref<!tpu.dma_semaphore, #tpu.memory_space<semaphore_mem>>
    tpu.wait_dma2 semaphore(%76 : memref<!tpu.dma_semaphore, #tpu.memory_space<semaphore_mem>>) src(%73 : memref<1x128xf32, #tpu.memory_space<any>>) dst(%74 : memref<1x128xf32, #tpu.memory_space<vmem>>)
    %c5_i32_52 = arith.constant 5 : i32
    %c0_i32_53 = arith.constant 0 : i32
    %77 = tpu.memref_slice %arg2[%38, %c0_i32_53] : memref<32x128xf32, #tpu.memory_space<any>> -> memref<1x128xf32, #tpu.memory_space<any>>
    %c5_i32_54 = arith.constant 5 : i32
    %c0_i32_55 = arith.constant 0 : i32
    %78 = tpu.memref_slice %arg6[%c5_i32_54, %c0_i32_55] : memref<8x128xf32, #tpu.memory_space<vmem>> -> memref<1x128xf32, #tpu.memory_space<vmem>>
    %79 = tpu.memref_slice %arg7[%c5_i32_52] : memref<8x!tpu.dma_semaphore, #tpu.memory_space<semaphore_mem>> -> memref<1x!tpu.dma_semaphore, #tpu.memory_space<semaphore_mem>>
    %80 = tpu.memref_squeeze %79 : memref<1x!tpu.dma_semaphore, #tpu.memory_space<semaphore_mem>> -> memref<!tpu.dma_semaphore, #tpu.memory_space<semaphore_mem>>
    tpu.wait_dma2 semaphore(%80 : memref<!tpu.dma_semaphore, #tpu.memory_space<semaphore_mem>>) src(%77 : memref<1x128xf32, #tpu.memory_space<any>>) dst(%78 : memref<1x128xf32, #tpu.memory_space<vmem>>)
    %c6_i32_56 = arith.constant 6 : i32
    %c0_i32_57 = arith.constant 0 : i32
    %81 = tpu.memref_slice %arg2[%45, %c0_i32_57] : memref<32x128xf32, #tpu.memory_space<any>> -> memref<1x128xf32, #tpu.memory_space<any>>
    %c6_i32_58 = arith.constant 6 : i32
    %c0_i32_59 = arith.constant 0 : i32
    %82 = tpu.memref_slice %arg6[%c6_i32_58, %c0_i32_59] : memref<8x128xf32, #tpu.memory_space<vmem>> -> memref<1x128xf32, #tpu.memory_space<vmem>>
    %83 = tpu.memref_slice %arg7[%c6_i32_56] : memref<8x!tpu.dma_semaphore, #tpu.memory_space<semaphore_mem>> -> memref<1x!tpu.dma_semaphore, #tpu.memory_space<semaphore_mem>>
    %84 = tpu.memref_squeeze %83 : memref<1x!tpu.dma_semaphore, #tpu.memory_space<semaphore_mem>> -> memref<!tpu.dma_semaphore, #tpu.memory_space<semaphore_mem>>
    tpu.wait_dma2 semaphore(%84 : memref<!tpu.dma_semaphore, #tpu.memory_space<semaphore_mem>>) src(%81 : memref<1x128xf32, #tpu.memory_space<any>>) dst(%82 : memref<1x128xf32, #tpu.memory_space<vmem>>)
    %c7_i32_60 = arith.constant 7 : i32
    %c0_i32_61 = arith.constant 0 : i32
    %85 = tpu.memref_slice %arg2[%52, %c0_i32_61] : memref<32x128xf32, #tpu.memory_space<any>> -> memref<1x128xf32, #tpu.memory_space<any>>
    %c7_i32_62 = arith.constant 7 : i32
    %c0_i32_63 = arith.constant 0 : i32
    %86 = tpu.memref_slice %arg6[%c7_i32_62, %c0_i32_63] : memref<8x128xf32, #tpu.memory_space<vmem>> -> memref<1x128xf32, #tpu.memory_space<vmem>>
    %87 = tpu.memref_slice %arg7[%c7_i32_60] : memref<8x!tpu.dma_semaphore, #tpu.memory_space<semaphore_mem>> -> memref<1x!tpu.dma_semaphore, #tpu.memory_space<semaphore_mem>>
    %88 = tpu.memref_squeeze %87 : memref<1x!tpu.dma_semaphore, #tpu.memory_space<semaphore_mem>> -> memref<!tpu.dma_semaphore, #tpu.memory_space<semaphore_mem>>
    tpu.wait_dma2 semaphore(%88 : memref<!tpu.dma_semaphore, #tpu.memory_space<semaphore_mem>>) src(%85 : memref<1x128xf32, #tpu.memory_space<any>>) dst(%86 : memref<1x128xf32, #tpu.memory_space<vmem>>)
    %c0 = arith.constant 0 : index
    %c0_64 = arith.constant 0 : index
    %89 = vector.load %arg6[%c0, %c0_64] : memref<8x128xf32, #tpu.memory_space<vmem>>, vector<8x128xf32>
    %cst = arith.constant 2.000000e+00 : f32
    %90 = vector.broadcast %cst : f32 to vector<8x128xf32>
    %91 = arith.mulf %89, %90 : vector<8x128xf32>
    %92 = arith.truncf %91 : vector<8x128xf32> to vector<8x128xbf16>
    %c0_65 = arith.constant 0 : index
    %c0_66 = arith.constant 0 : index
    %93 = vector.load %arg3[%c0_65, %c0_66] : memref<128x128xbf16, #tpu.memory_space<vmem>>, vector<128x128xbf16>
    %cst_67 = arith.constant dense<0.000000e+00> : vector<8x128xf32>
    %94 = tpu.matmul %92, %93, %cst_67 {dimension_numbers = #tpu.dot_dimension_numbers<[1], [0], [0], [1], [0, 0, 1, 1], [], []>} : vector<8x128xbf16>, vector<128x128xbf16>, vector<8x128xf32> -> vector<8x128xf32>
    %c0_68 = arith.constant 0 : index
    %c0_69 = arith.constant 0 : index
    %95 = vector.load %arg4[%c0_68, %c0_69] : memref<1x128xf32, #tpu.memory_space<vmem>>, vector<1x128xf32>
    %96 = vector.broadcast %95 : vector<1x128xf32> to vector<8x128xf32>
    %97 = arith.addf %94, %96 : vector<8x128xf32>
    %cst_70 = arith.constant 5.000000e-01 : f32
    %98 = vector.broadcast %cst_70 : f32 to vector<8x128xf32>
    %99 = arith.mulf %98, %97 : vector<8x128xf32>
    %cst_71 = arith.constant 0.707106769 : f32
    %100 = vector.broadcast %cst_71 : f32 to vector<8x128xf32>
    %101 = arith.mulf %97, %100 : vector<8x128xf32>
    %102 = math.erf %101 : vector<8x128xf32>
    %cst_72 = arith.constant 1.000000e+00 : f32
    %103 = vector.broadcast %cst_72 : f32 to vector<8x128xf32>
    %104 = arith.addf %103, %102 : vector<8x128xf32>
    %105 = arith.mulf %99, %104 : vector<8x128xf32>
    %c0_73 = arith.constant 0 : index
    %c0_74 = arith.constant 0 : index
    %106 = vector.load %arg5[%c0_73, %c0_74] : memref<8x128xf32, #tpu.memory_space<vmem>>, vector<8x128xf32>
    tpu.vector_store %arg5[%c0_73, %c0_74], %105 {strides = array<i32>} : memref<8x128xf32, #tpu.memory_space<vmem>>, vector<8x128xf32>,
    return
  }
  func.func @transform_1(%arg0: i32, %arg1: memref<16xi32, #tpu.memory_space<smem>>) -> (i32, i32) {
    %c0_i32 = arith.constant 0 : i32
    %c0_i32_0 = arith.constant 0 : i32
    %c0_i32_1 = arith.constant 0 : i32
    return %c0_i32, %c0_i32_0 : i32, i32
  }
  func.func @transform_2(%arg0: i32, %arg1: memref<16xi32, #tpu.memory_space<smem>>) -> (i32, i32) {
    %c0_i32 = arith.constant 0 : i32
    %c0_i32_0 = arith.constant 0 : i32
    %c0_i32_1 = arith.constant 0 : i32
    return %c0_i32, %c0_i32_0 : i32, i32
  }
  func.func @transform_3(%arg0: i32, %arg1: memref<16xi32, #tpu.memory_space<smem>>) -> (i32, i32) {
    %c0_i32 = arith.constant 0 : i32
    %c0_i32_0 = arith.constant 0 : i32
    return %arg0, %c0_i32 : i32, i32
  }
}

</mosaic_0001>

<llo_original>
// kernel: tpu_custom_call.1
$region0: #{tpu_custom_call.1}
  #allocation0 [shape = 'u32[]', space=smem, size = 0x4, offset = 0x4, fixed_abs, tag = 'smem constant byte address 0x4 - core index']
  #allocation1 [shape = 'u32[144,128]{1,0:T(1,128)}', space=vmem, size = 0x12000, scoped, tag = 'internal scratch']
  #allocation2 [shape = 'f32[8,128]{1,0:T(8,128)}', space=vmem, size = 0x1000, scoped, tag = 'scratch operand']
  #allocation3 [shape = 's32[8]{0}', space=sflag, size = 0x20, scoped, tag = 'scratch operand']
  #allocation4 [shape = 's32[1]{0}', space=sflag, size = 0x4, scoped, tag = 'scoped memory for tpu_custom_call.1']
  #allocation5 [shape = 'u8[512]{0}', space=smem, size = 0x200, scoped, tag = 'prefetched SMEM operand 0']
  #allocation10 [shape = 's32[]', space=sflag, size = 0x4, offset = 0, fixed_abs, tag = 'sflag constant byte address 0x0 - dummy sync flag']
  #allocation11 [shape = 's32[]', space=sflag, size = 0x4, offset = 0, fixed_abs, tag = 'sflag constant byte address 0x0 - dummy sync flag']
  #allocation12 [shape = 'u32[]', space=smem, size = 0x4, offset = 0x44, fixed_abs, tag = 'smem constant byte address 0x44 - assertion arg 0']
  #allocation13 [shape = 'u32[]', space=smem, size = 0x4, offset = 0x48, fixed_abs, tag = 'smem constant byte address 0x48 - assertion arg 1']
  #allocation14 [shape = 's32[]', space=sflag, size = 0x4, offset = 0, fixed_abs, tag = 'sflag constant byte address 0x0 - dummy sync flag']
  #allocation15 [shape = 's32[]', space=sflag, size = 0x4, offset = 0, fixed_abs, tag = 'sflag constant byte address 0x0 - dummy sync flag']
  #allocation16 [shape = 's32[]', space=sflag, size = 0x4, offset = 0, fixed_abs, tag = 'sflag constant byte address 0x0 - dummy sync flag']
  #allocation17 [shape = 's32[]', space=sflag, size = 0x4, offset = 0, fixed_abs, tag = 'sflag constant byte address 0x0 - dummy sync flag']
  #allocation18 [shape = 's32[]', space=sflag, size = 0x4, offset = 0, fixed_abs, tag = 'sflag constant byte address 0x0 - dummy sync flag']
  #allocation19 [shape = 's32[]', space=sflag, size = 0x4, offset = 0, fixed_abs, tag = 'sflag constant byte address 0x0 - dummy sync flag']
  #allocation20 [shape = 's32[]', space=sflag, size = 0x4, offset = 0, fixed_abs, tag = 'sflag constant byte address 0x0 - dummy sync flag']
  #allocation21 [shape = 's32[]', space=sflag, size = 0x4, offset = 0, fixed_abs, tag = 'sflag constant byte address 0x0 - dummy sync flag']
  #allocation22 [shape = 's32[]', space=sflag, size = 0x4, offset = 0, fixed_abs, tag = 'sflag constant byte address 0x0 - dummy sync flag']
  #allocation23 [shape = 's32[]', space=sflag, size = 0x4, offset = 0, fixed_abs, tag = 'sflag constant byte address 0x0 - dummy sync flag']
  #allocation24 [shape = 's32[]', space=sflag, size = 0x4, offset = 0, fixed_abs, tag = 'sflag constant byte address 0x0 - dummy sync flag']
  #allocation25 [shape = 's32[]', space=sflag, size = 0x4, offset = 0, fixed_abs, tag = 'sflag constant byte address 0x0 - dummy sync flag']
  #allocation26 [shape = 's32[]', space=sflag, size = 0x4, offset = 0, fixed_abs, tag = 'sflag constant byte address 0x0 - dummy sync flag']
  #allocation27 [shape = 's32[]', space=sflag, size = 0x4, offset = 0, fixed_abs, tag = 'sflag constant byte address 0x0 - dummy sync flag']
  %s0 = inlined_call_operand.hbm [shape: s32[16], index: 0, kind: input, shape index: {}]
  %s1 = inlined_call_operand.hbm [shape: f32[32,128], index: 1, kind: input, shape index: {}]
  %s2 = inlined_call_operand.hbm [shape: bf16[128,128], index: 2, kind: input, shape index: {}]
  %s3 = inlined_call_operand.vmem [shape: f32[1,128], index: 3, kind: input, shape index: {}]
  %s4 = inlined_call_operand.hbm [shape: f32[16,128], index: 4, kind: output, shape index: {}]
  %s5 = sld [smem:[#allocation0]]
  $region77: #{tpu_custom_call.1} parent=0
    _
  %s7 = ssub.s32 1, %s5
  %s8 = scalar_select 0, %s7, %s5
  %10 = dma.hbm_to_smem %s0, 16, [#allocation5], [#allocation4]
  %11 = dma.done [#allocation4], 16
  %12 = sfence
  $region1: #{tpu_custom_call.1} parent=0
    #allocation6 [shape = 'u8[32768]{0}', space=vmem, size = 0x8000, scoped, tag = 'input window, operand 2, single buffered']
    #allocation7 [shape = 's32[2]{0}', space=sflag, size = 0x8, scoped, tag = 'scoped memory for tpu_custom_call.1']
    #allocation8 [shape = 's32[2]{0}', space=sflag, size = 0x8, scoped, tag = 'scoped memory for tpu_custom_call.1']
    #allocation9 [shape = 'u8[8192]{0}', space=vmem, size = 0x2000, scoped, tag = 'output window, operand 0']
    %13 = vsyncpa [#allocation7], 0
    %14 = vsyncpa [#allocation8], 0
    %s15 = scalar_lea.sflag [#allocation8], 1
    %16 = vsyncpa %s15, 0
    loop: start=0, step=1, limit=4
    $region2: #{tpu_custom_call.1} parent=1 // loop_pre_header
      _
    $region3: #{tpu_custom_call.1} parent=1 // loop_header
      %s18 = sphi 0, %s22
      %p19 = scmp.ge.s32.totalorder %s18, 4
      %s26 = sphi 0, %s26
      %s28 = sphi 0, %s26
      %s29 = sphi 0, %s28
      %s43 = sphi 0, %s29
      %s47 = sphi 0, %s47
      %s49 = sphi 0, %s47
      %s50 = sphi 0, %s49
      %s64 = sphi 0, %s50
      %s70 = sphi 0, %s72
      %s73 = sphi 0, %s70
      %s74 = sphi 0, %s73
      %s90 = sphi 0, %s74
    $region4: #{tpu_custom_call.1} parent=1 // loop_header_branch
      %21 = sbr.rel (%p19) target = $region8
    $region5: #{tpu_custom_call.1} parent=1 // loop_body
      %s23 = ssub.s32 %s18, 1
      %s24 = ssub.s32 %s18, 2
      %s25 = sadd.s32 %s18, 1
      %s27 = sadd.s32 %s26, 1
      %p30 = scmp.eq.s32.totalorder %s18, 1
      %p31 = scmp.ne.s32.totalorder %s26, %s28
      %p32 = scmp.eq.s32.totalorder %s18, 0
      %p33 = por %p31, %p32
      %p34 = scmp.ne.s32.totalorder %s26, %s28
      %p35 = scmp.eq.s32.totalorder %s23, 1
      %p36 = por %p34, %p35
      %p37 = scmp.ne.s32.totalorder %s28, %s29
      %p38 = scmp.eq.s32.totalorder %s23, 0
      %p39 = por %p37, %p38
      %p40 = scmp.ne.s32.totalorder %s28, %s29
      %p41 = scmp.eq.s32.totalorder %s24, 1
      %p42 = por %p40, %p41
      %p44 = scmp.ne.s32.totalorder %s29, %s43
      %p45 = scmp.eq.s32.totalorder %s24, 0
      %p46 = por %p44, %p45
      %s48 = sadd.s32 %s47, 1
      %p51 = scmp.eq.s32.totalorder %s18, 1
      %p52 = scmp.ne.s32.totalorder %s47, %s49
      %p53 = scmp.eq.s32.totalorder %s18, 0
      %p54 = por %p52, %p53
      %p55 = scmp.ne.s32.totalorder %s47, %s49
      %p56 = scmp.eq.s32.totalorder %s23, 1
      %p57 = por %p55, %p56
      %p58 = scmp.ne.s32.totalorder %s49, %s50
      %p59 = scmp.eq.s32.totalorder %s23, 0
      %p60 = por %p58, %p59
      %p61 = scmp.ne.s32.totalorder %s49, %s50
      %p62 = scmp.eq.s32.totalorder %s24, 1
      %p63 = por %p61, %p62
      %p65 = scmp.ne.s32.totalorder %s50, %s64
      %p66 = scmp.eq.s32.totalorder %s24, 0
      %p67 = por %p65, %p66
      %s68 = ssub.s32 %s18, %s25
      %p69 = scmp.eq.s32.totalorder %s68, 0
      %s71 = sadd.s32 %s70, 1
      %s72 = scalar_select %p69, %s70, %s71
      %p75 = pneg %p69
      %p76 = scmp.eq.s32.totalorder %s18, 1
      %p77 = por %p75, %p76
      %p78 = scmp.ne.s32.totalorder %s70, %s73
      %p79 = scmp.eq.s32.totalorder %s18, 0
      %p80 = por %p78, %p79
      %p81 = scmp.ne.s32.totalorder %s70, %s73
      %p82 = scmp.eq.s32.totalorder %s23, 1
      %p83 = por %p81, %p82
      %p84 = scmp.ne.s32.totalorder %s73, %s74
      %p85 = scmp.eq.s32.totalorder %s23, 0
      %p86 = por %p84, %p85
      %p87 = scmp.ne.s32.totalorder %s73, %s74
      %p88 = scmp.eq.s32.totalorder %s24, 1
      %p89 = por %p87, %p88
      %p91 = scmp.ne.s32.totalorder %s74, %s90
      %p92 = scmp.eq.s32.totalorder %s24, 0
      %p93 = por %p91, %p92
      %p94 = scmp.le.s32.totalorder 1, %s18
      %p95 = scmp.lt.s32.totalorder %s18, 3
      %p96 = pnand %p94, %p95
      %p97 = pneg %p96
      // Predicated region
      $region9: #{tpu_custom_call.1} parent=5 // pred_check
        _
      $region10: #{tpu_custom_call.1} parent=5 // pred_check_branch
        %99 = sbr.rel (%p96) target = $region12
      $region11: #{tpu_custom_call.1} parent=5 // pred_region
        %s100 = ssub.s32 %s18, 1
        // Predicated region
        $region13: #{tpu_custom_call.1} parent=11 // pred_check
          %p101 = pneg %p39
        $region14: #{tpu_custom_call.1} parent=11 // pred_check_branch
          %103 = sbr.rel (%p101) target = $region16
        $region15: #{tpu_custom_call.1} parent=11 // pred_region
          %s105 = ssub.s32 1024, 1024
          %106 = vsyncadd [#allocation7], %s105
          %s107 = sshll.u32 [#allocation6], 4
          %s108 = int_to_ptr.vmem [resolvable:$true] %s107
          %113 = dma.hbm_to_vmem [thread:$0]  %s2, 1024, %s108, [#allocation7], 64, 64, 4
        $region16: #{tpu_custom_call.1} parent=11 // pred_fallthru
          _
        // Predicated region
        $region17: #{tpu_custom_call.1} parent=11 // pred_check
          %p114 = pneg %p60
        $region18: #{tpu_custom_call.1} parent=11 // pred_check_branch
          %116 = sbr.rel (%p114) target = $region20
        $region19: #{tpu_custom_call.1} parent=11 // pred_region
          _
        $region20: #{tpu_custom_call.1} parent=11 // pred_fallthru
          _
      $region12: #{tpu_custom_call.1} parent=5 // pred_fallthru
        _
      %p117 = scmp.lt.s32.totalorder %s18, 2
      // Predicated region
      $region21: #{tpu_custom_call.1} parent=5 // pred_check
        %p118 = pneg %p117
      $region22: #{tpu_custom_call.1} parent=5 // pred_check_branch
        %120 = sbr.rel (%p118) target = $region24
      $region23: #{tpu_custom_call.1} parent=5 // pred_region
        _
      $region24: #{tpu_custom_call.1} parent=5 // pred_fallthru
        _
      %p121 = scmp.le.s32.totalorder 1, %s18
      %p122 = scmp.lt.s32.totalorder %s18, 3
      %p123 = pnand %p121, %p122
      %p124 = pneg %p123
      // Predicated region
      $region25: #{tpu_custom_call.1} parent=5 // pred_check
        _
      $region26: #{tpu_custom_call.1} parent=5 // pred_check_branch
        %126 = sbr.rel (%p123) target = $region28
      $region27: #{tpu_custom_call.1} parent=5 // pred_region
        %s127 = ssub.s32 %s18, 1
        // Predicated region
        $region29: #{tpu_custom_call.1} parent=27 // pred_check
          %p128 = pneg %p39
        $region30: #{tpu_custom_call.1} parent=27 // pred_check_branch
          %130 = sbr.rel (%p128) target = $region32
        $region31: #{tpu_custom_call.1} parent=27 // pred_region
          %131 = dma.done [#allocation7], 1024
        $region32: #{tpu_custom_call.1} parent=27 // pred_fallthru
          _
        %p132 = pneg %p39
        %p133 = pneg %p36
        %p134 = pneg %p60
        %p135 = pneg %p57
        %p136 = pneg %p86
        %p137 = pneg %p83
        %s138 = sand.u32 %s73, 1
        %s139 = scalar_lea.sflag [#allocation8], %s138
        %s140 = sand.u32 %s73, 1
        %s141 = smul.addr %s140, 8
        %s142 = scalar_lea.vmem [#allocation9], %s141
        %s144 = smul.u32 %s23, 8
        %s145 = sld [smem:[#allocation5 + %s144]]
        %s146 = smul.addr %s145, 16
        %s147 = scalar_lea.hbm %s1, %s146
        // Predicated region
        $region33: #{tpu_custom_call.1} parent=27 // pred_check
          _
        $region34: #{tpu_custom_call.1} parent=27 // pred_check_branch
          %149 = sbr.rel target = $region36
        $region35: #{tpu_custom_call.1} parent=27 // pred_region
          %150 = sst [smem:[#allocation12]] [#allocation11]
          %151 = sst [smem:[#allocation13]] [#allocation10]
        $region36: #{tpu_custom_call.1} parent=27 // pred_fallthru
          _
        %153 = shalt.err (0)
        %s155 = sshll.u32 [#allocation2], 4
        %s156 = int_to_ptr.vmem [resolvable:$true] %s155
        %158 = dma.hbm_to_vmem [thread:$0]  %s147, 16, %s156, [#allocation3]
        %s159 = sadd.s32 %s144, 1
        %s160 = sld [smem:[#allocation5 + %s159]]
        %s161 = smul.addr %s160, 16
        %s162 = scalar_lea.hbm %s1, %s161
        %s163 = scalar_lea.vmem [#allocation2], 1
        %s164 = scalar_lea.sflag [#allocation3], 1
        // Predicated region
        $region37: #{tpu_custom_call.1} parent=27 // pred_check
          _
        $region38: #{tpu_custom_call.1} parent=27 // pred_check_branch
          %166 = sbr.rel target = $region40
        $region39: #{tpu_custom_call.1} parent=27 // pred_region
          %167 = sst [smem:[#allocation12]] [#allocation15]
          %168 = sst [smem:[#allocation13]] [#allocation14]
        $region40: #{tpu_custom_call.1} parent=27 // pred_fallthru
          _
        %170 = shalt.err (0)
        %s172 = sshll.u32 %s163, 4
        %s173 = int_to_ptr.vmem [resolvable:$true] %s172
        %175 = dma.hbm_to_vmem [thread:$0]  %s162, 16, %s173, %s164
        %s176 = sadd.s32 %s144, 2
        %s177 = sld [smem:[#allocation5 + %s176]]
        %s178 = smul.addr %s177, 16
        %s179 = scalar_lea.hbm %s1, %s178
        %s180 = scalar_lea.vmem [#allocation2], 2
        %s181 = scalar_lea.sflag [#allocation3], 2
        // Predicated region
        $region41: #{tpu_custom_call.1} parent=27 // pred_check
          _
        $region42: #{tpu_custom_call.1} parent=27 // pred_check_branch
          %183 = sbr.rel target = $region44
        $region43: #{tpu_custom_call.1} parent=27 // pred_region
          %184 = sst [smem:[#allocation12]] [#allocation17]
          %185 = sst [smem:[#allocation13]] [#allocation16]
        $region44: #{tpu_custom_call.1} parent=27 // pred_fallthru
          _
        %187 = shalt.err (0)
        %s189 = sshll.u32 %s180, 4
        %s190 = int_to_ptr.vmem [resolvable:$true] %s189
        %192 = dma.hbm_to_vmem [thread:$0]  %s179, 16, %s190, %s181
        %s193 = sadd.s32 %s144, 3
        %s194 = sld [smem:[#allocation5 + %s193]]
        %s195 = smul.addr %s194, 16
        %s196 = scalar_lea.hbm %s1, %s195
        %s197 = scalar_lea.vmem [#allocation2], 3
        %s198 = scalar_lea.sflag [#allocation3], 3
        // Predicated region
        $region45: #{tpu_custom_call.1} parent=27 // pred_check
          _
        $region46: #{tpu_custom_call.1} parent=27 // pred_check_branch
          %200 = sbr.rel target = $region48
        $region47: #{tpu_custom_call.1} parent=27 // pred_region
          %201 = sst [smem:[#allocation12]] [#allocation19]
          %202 = sst [smem:[#allocation13]] [#allocation18]
        $region48: #{tpu_custom_call.1} parent=27 // pred_fallthru
          _
        %204 = shalt.err (0)
        %s206 = sshll.u32 %s197, 4
        %s207 = int_to_ptr.vmem [resolvable:$true] %s206
        %209 = dma.hbm_to_vmem [thread:$0]  %s196, 16, %s207, %s198
        %s210 = sadd.s32 %s144, 4
        %s211 = sld [smem:[#allocation5 + %s210]]
        %s212 = smul.addr %s211, 16
        %s213 = scalar_lea.hbm %s1, %s212
        %s214 = scalar_lea.vmem [#allocation2], 4
        %s215 = scalar_lea.sflag [#allocation3], 4
        // Predicated region
        $region49: #{tpu_custom_call.1} parent=27 // pred_check
          _
        $region50: #{tpu_custom_call.1} parent=27 // pred_check_branch
          %217 = sbr.rel target = $region52
        $region51: #{tpu_custom_call.1} parent=27 // pred_region
          %218 = sst [smem:[#allocation12]] [#allocation21]
          %219 = sst [smem:[#allocation13]] [#allocation20]
        $region52: #{tpu_custom_call.1} parent=27 // pred_fallthru
          _
        %221 = shalt.err (0)
        %s223 = sshll.u32 %s214, 4
        %s224 = int_to_ptr.vmem [resolvable:$true] %s223
        %226 = dma.hbm_to_vmem [thread:$0]  %s213, 16, %s224, %s215
        %s227 = sadd.s32 %s144, 5
        %s228 = sld [smem:[#allocation5 + %s227]]
        %s229 = smul.addr %s228, 16
        %s230 = scalar_lea.hbm %s1, %s229
        %s231 = scalar_lea.vmem [#allocation2], 5
        %s232 = scalar_lea.sflag [#allocation3], 5
        // Predicated region
        $region53: #{tpu_custom_call.1} parent=27 // pred_check
          _
        $region54: #{tpu_custom_call.1} parent=27 // pred_check_branch
          %234 = sbr.rel target = $region56
        $region55: #{tpu_custom_call.1} parent=27 // pred_region
          %235 = sst [smem:[#allocation12]] [#allocation23]
          %236 = sst [smem:[#allocation13]] [#allocation22]
        $region56: #{tpu_custom_call.1} parent=27 // pred_fallthru
          _
        %238 = shalt.err (0)
        %s240 = sshll.u32 %s231, 4
        %s241 = int_to_ptr.vmem [resolvable:$true] %s240
        %243 = dma.hbm_to_vmem [thread:$0]  %s230, 16, %s241, %s232
        %s244 = sadd.s32 %s144, 6
        %s245 = sld [smem:[#allocation5 + %s244]]
        %s246 = smul.addr %s245, 16
        %s247 = scalar_lea.hbm %s1, %s246
        %s248 = scalar_lea.vmem [#allocation2], 6
        %s249 = scalar_lea.sflag [#allocation3], 6
        // Predicated region
        $region57: #{tpu_custom_call.1} parent=27 // pred_check
          _
        $region58: #{tpu_custom_call.1} parent=27 // pred_check_branch
          %251 = sbr.rel target = $region60
        $region59: #{tpu_custom_call.1} parent=27 // pred_region
          %252 = sst [smem:[#allocation12]] [#allocation25]
          %253 = sst [smem:[#allocation13]] [#allocation24]
        $region60: #{tpu_custom_call.1} parent=27 // pred_fallthru
          _
        %255 = shalt.err (0)
        %s257 = sshll.u32 %s248, 4
        %s258 = int_to_ptr.vmem [resolvable:$true] %s257
        %260 = dma.hbm_to_vmem [thread:$0]  %s247, 16, %s258, %s249
        %s261 = sadd.s32 %s144, 7
        %s262 = sld [smem:[#allocation5 + %s261]]
        %s263 = smul.addr %s262, 16
        %s264 = scalar_lea.hbm %s1, %s263
        %s265 = scalar_lea.vmem [#allocation2], 7
        %s266 = scalar_lea.sflag [#allocation3], 7
        // Predicated region
        $region61: #{tpu_custom_call.1} parent=27 // pred_check
          _
        $region62: #{tpu_custom_call.1} parent=27 // pred_check_branch
          %268 = sbr.rel target = $region64
        $region63: #{tpu_custom_call.1} parent=27 // pred_region
          %269 = sst [smem:[#allocation12]] [#allocation27]
          %270 = sst [smem:[#allocation13]] [#allocation26]
        $region64: #{tpu_custom_call.1} parent=27 // pred_fallthru
          _
        %272 = shalt.err (0)
        %s274 = sshll.u32 %s265, 4
        %s275 = int_to_ptr.vmem [resolvable:$true] %s274
        %277 = dma.hbm_to_vmem [thread:$0]  %s264, 16, %s275, %s266
        %s278 = smul.u32 1, 1
        %s279 = sshll.u32 %s278, 4
        %280 = dma.done [#allocation3], %s279
        %s281 = sshll.u32 %s278, 4
        %282 = dma.done %s164, %s281
        %s283 = sshll.u32 %s278, 4
        %284 = dma.done %s181, %s283
        %s285 = sshll.u32 %s278, 4
        %286 = dma.done %s198, %s285
        %s287 = sshll.u32 %s278, 4
        %288 = dma.done %s215, %s287
        %s289 = sshll.u32 %s278, 4
        %290 = dma.done %s232, %s289
        %s291 = sshll.u32 %s278, 4
        %292 = dma.done %s249, %s291
        %s293 = sshll.u32 %s278, 4
        %294 = dma.done %s266, %s293
        %v295 = vld [vmem:[#allocation2] sm:$0xff]
        %v296 = vmul.f32 %v295, 2.0
        %v297 = vpack.c.bf16 %v296, %v296
        %v298 = vld [vmem:[#allocation6] sm:$0xf]
        %v299 = vld [vmem:[#allocation6 + $0x4] sm:$0xf]
        %v300 = vld [vmem:[#allocation6 + $0x8] sm:$0xf]
        %v301 = vld [vmem:[#allocation6 + $0xc] sm:$0xf]
        %v302 = vld [vmem:[#allocation6 + $0x10] sm:$0xf]
        %v303 = vld [vmem:[#allocation6 + $0x14] sm:$0xf]
        %v304 = vld [vmem:[#allocation6 + $0x18] sm:$0xf]
        %v305 = vld [vmem:[#allocation6 + $0x1c] sm:$0xf]
        %v306 = vld [vmem:[#allocation6 + $0x20] sm:$0xf]
        %v307 = vld [vmem:[#allocation6 + $0x24] sm:$0xf]
        %v308 = vld [vmem:[#allocation6 + $0x28] sm:$0xf]
        %v309 = vld [vmem:[#allocation6 + $0x2c] sm:$0xf]
        %v310 = vld [vmem:[#allocation6 + $0x30] sm:$0xf]
        %v311 = vld [vmem:[#allocation6 + $0x34] sm:$0xf]
        %v312 = vld [vmem:[#allocation6 + $0x38] sm:$0xf]
        %v313 = vld [vmem:[#allocation6 + $0x3c] sm:$0xf]
        %v314 = vld [vmem:[%s3] sm:$0x1]
        %v316 = vlaneseq
        %v317 = vshrl.u32 %v316, 7
        %v318 = vsub.s32 0, %v317
        %v319 = vrot.slane %v314, %v318
        %v337 = vunpack.c.l.b16 %v298
        %v338 = vunpack.c.l.b16 %v299
        %v339 = vunpack.c.l.b16 %v300
        %v340 = vunpack.c.l.b16 %v301
        %v341 = vunpack.c.l.b16 %v302
        %v342 = vunpack.c.l.b16 %v303
        %v343 = vunpack.c.l.b16 %v304
        %v344 = vunpack.c.l.b16 %v305
        %v345 = vunpack.c.l.b16 %v306
        %v346 = vunpack.c.l.b16 %v307
        %v347 = vunpack.c.l.b16 %v308
        %v348 = vunpack.c.l.b16 %v309
        %v349 = vunpack.c.l.b16 %v310
        %v350 = vunpack.c.l.b16 %v311
        %v351 = vunpack.c.l.b16 %v312
        %v352 = vunpack.c.l.b16 %v313
        %v353 = vpack.c.b16 %v338, %v337
        %v354 = vpack.c.b16 %v340, %v339
        %v355 = vpack.c.b16 %v342, %v341
        %v356 = vpack.c.b16 %v344, %v343
        %v357 = vpack.c.b16 %v346, %v345
        %v358 = vpack.c.b16 %v348, %v347
        %v359 = vpack.c.b16 %v350, %v349
        %v360 = vpack.c.b16 %v352, %v351
        %369 = vmatprep.subr.bf16.mxu0 0
        %370 = vmatpush1.bf16.msra.mxu0 %v353
        %371 = vmatprep.subr.bf16.mxu0 0
        %372 = vmatpush1.bf16.msra.mxu0 %v354
        %373 = vmatprep.subr.bf16.mxu0 0
        %374 = vmatpush1.bf16.msra.mxu0 %v355
        %375 = vmatprep.subr.bf16.mxu0 0
        %376 = vmatpush1.bf16.msra.mxu0 %v356
        %377 = vmatprep.subr.bf16.mxu0 0
        %378 = vmatpush1.bf16.msra.mxu0 %v357
        %379 = vmatprep.subr.bf16.mxu0 0
        %380 = vmatpush1.bf16.msra.mxu0 %v358
        %381 = vmatprep.subr.bf16.mxu0 0
        %382 = vmatpush1.bf16.msra.mxu0 %v359
        %383 = vmatprep.subr.bf16.mxu0 0
        %384 = vmatpush1.bf16.msra.mxu0 %v360
        %385 = vmatprep.subr.bf16.mxu0 0
        %386 = vmatpush1.bf16.msra.mxu0 0
        %387 = vmatprep.subr.bf16.mxu0 0
        %388 = vmatpush1.bf16.msra.mxu0 0
        %389 = vmatprep.subr.bf16.mxu0 0
        %390 = vmatpush1.bf16.msra.mxu0 0
        %391 = vmatprep.subr.bf16.mxu0 0
        %392 = vmatpush1.bf16.msra.mxu0 0
        %393 = vmatprep.subr.bf16.mxu0 0
        %394 = vmatpush1.bf16.msra.mxu0 0
        %395 = vmatprep.subr.bf16.mxu0 0
        %396 = vmatpush1.bf16.msra.mxu0 0
        %397 = vmatprep.subr.bf16.mxu0 0
        %398 = vmatpush1.bf16.msra.mxu0 0
        %399 = vmatprep.subr.bf16.mxu0 0
        %400 = vmatpush1.bf16.msra.mxu0 0
        %401 = vmatprep.mubr.bf16.mxu0 0
        %402 = vmatmul.mubr.bf16.gmra.mrb[0].mxu0 %v297
        %v403 = vpop.f32.mrb[0].mxu0
        %v404 = vadd.f32 %v319, %v403
        %v405 = vpop.f32.mrb[0].mxu0
        %v406 = vpop.f32.mrb[0].mxu0
        %v407 = vpop.f32.mrb[0].mxu0
        %408 = vdwg.mxu0
        %v409 = vmul.f32 %v404, 0.5
        %v410 = vmul.f32 %v404, 0.70710677
        %v411 = verf.f32.pop %v410
        %v412 = vadd.f32 %v411, 1.0
        %v413 = vmul.f32 %v409, %v412
        %414 = vst [vmem:[%s142] sm:$0xff] %v413
        %s415 = sand.u32 %s73, 1
        %s416 = scalar_lea.sflag [#allocation8], %s415
        %s417 = sand.u32 %s73, 1
        %s418 = smul.addr %s417, 8
        %s419 = scalar_lea.vmem [#allocation9], %s418
        // Predicated region
        $region65: #{tpu_custom_call.1} parent=27 // pred_check
          %p420 = pneg %p83
        $region66: #{tpu_custom_call.1} parent=27 // pred_check_branch
          %422 = sbr.rel (%p420) target = $region68
        $region67: #{tpu_custom_call.1} parent=27 // pred_region
          %s424 = ssub.s32 128, 128
          %425 = vsyncadd %s416, %s424
          %s426 = smul.addr %s23, 128
          %s427 = scalar_lea.hbm %s4, %s426
          %s429 = sshll.u32 %s419, 4
          %s430 = int_to_ptr.vmem [resolvable:$true] %s429
          %432 = dma.vmem_to_hbm [thread:$0]  %s430, 128, %s427, %s416
        $region68: #{tpu_custom_call.1} parent=27 // pred_fallthru
          _
      $region28: #{tpu_custom_call.1} parent=5 // pred_fallthru
        _
      %p433 = scmp.le.s32.totalorder 2, %s18
      // Predicated region
      $region69: #{tpu_custom_call.1} parent=5 // pred_check
        %p434 = pneg %p433
      $region70: #{tpu_custom_call.1} parent=5 // pred_check_branch
        %436 = sbr.rel (%p434) target = $region72
      $region71: #{tpu_custom_call.1} parent=5 // pred_region
        %s437 = ssub.s32 %s18, 2
        // Predicated region
        $region73: #{tpu_custom_call.1} parent=71 // pred_check
          %p438 = pneg %p89
        $region74: #{tpu_custom_call.1} parent=71 // pred_check_branch
          %440 = sbr.rel (%p438) target = $region76
        $region75: #{tpu_custom_call.1} parent=71 // pred_region
          %s441 = sand.u32 %s74, 1
          %s442 = scalar_lea.sflag [#allocation8], %s441
          %s443 = sand.u32 %s74, 1
          %s444 = smul.addr %s443, 8
          %s445 = scalar_lea.vmem [#allocation9], %s444
          %446 = dma.done %s442, 128
        $region76: #{tpu_custom_call.1} parent=71 // pred_fallthru
          _
      $region72: #{tpu_custom_call.1} parent=5 // pred_fallthru
        _
    $region6: #{tpu_custom_call.1} parent=1 // loop_footer
      %s22 = sadd.s32 1, %s18
    $region7: #{tpu_custom_call.1} parent=1 // loop_footer_branch
      %17 = sbr.rel target = $region3
    $region8: #{tpu_custom_call.1} parent=1 // loop_exit
      _
    %447 = vsyncpa [#allocation7], 1
    %s448 = scalar_lea.sflag [#allocation7], 1
    %449 = vsyncpa %s448, 1
    %450 = vsyncpa [#allocation8], 1
    %s451 = scalar_lea.sflag [#allocation8], 1
    %452 = vsyncpa %s451, 1
  %453 = vsyncmov [#allocation3]
  %s454 = vpop.sfrf %453
  %p455 = scmp.eq.s32.totalorder %s454, 0
  %p456 = pneg %p455
  %458 = shalt.err (%p456)
  %s459 = scalar_lea.sflag [#allocation3], 1
  %460 = vsyncmov %s459
  %s461 = vpop.sfrf %460
  %p462 = scmp.eq.s32.totalorder %s461, 0
  %p463 = pneg %p462
  %465 = shalt.err (%p463)
  %s466 = scalar_lea.sflag [#allocation3], 2
  %467 = vsyncmov %s466
  %s468 = vpop.sfrf %467
  %p469 = scmp.eq.s32.totalorder %s468, 0
  %p470 = pneg %p469
  %472 = shalt.err (%p470)
  %s473 = scalar_lea.sflag [#allocation3], 3
  %474 = vsyncmov %s473
  %s475 = vpop.sfrf %474
  %p476 = scmp.eq.s32.totalorder %s475, 0
  %p477 = pneg %p476
  %479 = shalt.err (%p477)
  %s480 = scalar_lea.sflag [#allocation3], 4
  %481 = vsyncmov %s480
  %s482 = vpop.sfrf %481
  %p483 = scmp.eq.s32.totalorder %s482, 0
  %p484 = pneg %p483
  %486 = shalt.err (%p484)
  %s487 = scalar_lea.sflag [#allocation3], 5
  %488 = vsyncmov %s487
  %s489 = vpop.sfrf %488
  %p490 = scmp.eq.s32.totalorder %s489, 0
  %p491 = pneg %p490
  %493 = shalt.err (%p491)
  %s494 = scalar_lea.sflag [#allocation3], 6
  %495 = vsyncmov %s494
  %s496 = vpop.sfrf %495
  %p497 = scmp.eq.s32.totalorder %s496, 0
  %p498 = pneg %p497
  %500 = shalt.err (%p498)
  %s501 = scalar_lea.sflag [#allocation3], 7
  %502 = vsyncmov %s501
  %s503 = vpop.sfrf %502
  %p504 = scmp.eq.s32.totalorder %s503, 0
  %p505 = pneg %p504
  %507 = shalt.err (%p505)

</llo_original>
